<compile_context>
chip_gen: v7x
topology: tpu7x:2x2x1
jax: 0.10.0
libtpu: 0.0.40
codegen_flags: <defaults>
</compile_context>

<pallas_src>
import functools

import jax
import jax.numpy as jnp
from jax.experimental import pallas as pl
from jax.experimental.pallas import tpu as pltpu


def _round_up(n, m):
    return ((n + m - 1) // m) * m


def qnet_kernel(x_ref, wh_ref, bh_ref, wva_ref, bva_ref, o_ref, *,
                out_features, value_col):
    # ---- layer 1: hidden + ReLU (f32 accumulation, f32 epilogue) ----------
    x = x_ref[...]                                                   # (TB, in)
    h = jnp.dot(x, wh_ref[...], preferred_element_type=jnp.float32)
    h = jnp.maximum(h + bh_ref[...], 0.0)                            # (TB, H_PAD)

    # ---- layer 2: fused value|advantage -> ONE MXU pass --------------------
    h = h.astype(wva_ref.dtype)                                      # no-op in f32
    va = jnp.dot(h, wva_ref[...], preferred_element_type=jnp.float32)
    va = va + bva_ref[...]                                           # (TB, VA_PAD)

    v = va[:, value_col:value_col + 1]                               # (TB, 1)
    a = va[:, :out_features]                                         # (TB, out)
    # Padded columns are exact zeros (zero weights + zero bias), so a full-lane
    # XLU reduce minus the value column gives sum(advantages) unmasked.
    a_sum = jnp.sum(va, axis=1, keepdims=True) - v
    a_mean = a_sum * (1.0 / out_features)
    o_ref[...] = (a + (v - a_mean)).astype(o_ref.dtype)


def prepare_qnet_params(wh, bh, wv, bv, wa, ba, *, hidden_pad=128,
                        weight_dtype=jnp.float32):
    """Fuse value|advantage weights and zero-pad to lane-aligned shapes.

    wh: (in, hidden)   bh: (hidden,)
    wv: (hidden, 1)    bv: (1,)
    wa: (hidden, out)  ba: (out,)
    """
    in_f, hidden = wh.shape
    out_f = wa.shape[1]
    va_pad = _round_up(out_f + 1, 128)          # advantages | padding | value
    value_col = va_pad - 1

    wh_p = jnp.zeros((in_f, hidden_pad), jnp.float32).at[:, :hidden].set(wh)
    bh_p = jnp.zeros((1, hidden_pad), jnp.float32).at[:, :hidden].set(
        bh.reshape(1, hidden))
    w_va = (jnp.zeros((hidden_pad, va_pad), jnp.float32)
            .at[:hidden, :out_f].set(wa)
            .at[:hidden, value_col].set(wv.reshape(hidden)))
    b_va = (jnp.zeros((1, va_pad), jnp.float32)
            .at[0, :out_f].set(ba.reshape(out_f))
            .at[0, value_col].set(bv.reshape(())))

    # Weights may be stored narrow (bf16) for HBM/MXU (v6e/v7x); biases stay
    # f32 so the elementwise epilogue stays f32 (no bf16 VPU on v5e).
    return dict(
        wh=wh_p.astype(weight_dtype), bh=bh_p,
        w_va=w_va.astype(weight_dtype), b_va=b_va,
        out_features=out_f, value_col=value_col,
    )


def qnet_forward(x, params, *, tile_b=512):
    B, in_f = x.shape
    out_f = params["out_features"]
    wh, bh = params["wh"], params["bh"]
    w_va, b_va = params["w_va"], params["b_va"]
    h_pad, va_pad = wh.shape[1], w_va.shape[1]

    x = x.astype(wh.dtype)

    # Batch tiling: tile must be a sublane multiple; pad B up to a whole
    # number of tiles and slice the padding rows back off at the end.
    tile_b = max(8, min(tile_b, _round_up(B, 8)))
    b_pad = _round_up(B, tile_b)
    if b_pad != B:
        x = jnp.pad(x, ((0, b_pad - B), (0, 0)))
    grid = (b_pad // tile_b,)

    kernel = functools.partial(qnet_kernel, out_features=out_f,
                               value_col=params["value_col"])
    out = pl.pallas_call(
        kernel,
        out_shape=jax.ShapeDtypeStruct((b_pad, out_f), jnp.float32),
        grid_spec=pltpu.PrefetchScalarGridSpec(
            num_scalar_prefetch=0,
            grid=grid,
            in_specs=[
                pl.BlockSpec((tile_b, in_f), lambda i: (i, 0)),   # x: streamed
                pl.BlockSpec((in_f, h_pad), lambda i: (0, 0)),    # weights/biases:
                pl.BlockSpec((1, h_pad), lambda i: (0, 0)),       #   VMEM-resident,
                pl.BlockSpec((h_pad, va_pad), lambda i: (0, 0)),  #   DMA'd once
                pl.BlockSpec((1, va_pad), lambda i: (0, 0)),
            ],
            out_specs=pl.BlockSpec((tile_b, out_f), lambda i: (i, 0)),
        ),
        compiler_params=pltpu.CompilerParams(
            dimension_semantics=("parallel",),   # v7x: shard batch over 2 TCs
        ),
    )(x, wh, bh, w_va, b_va)
    return out[:B]


# ----------------------------- reference / init -----------------------------
def init_params(key, in_feature, out_feature, hidden=20):
    # Mimics PyTorch Linear default init U(-1/sqrt(fan_in), 1/sqrt(fan_in)).
    ks = jax.random.split(key, 6)

    def unif(k, shape, fan_in):
        bound = 1.0 / jnp.sqrt(jnp.float32(fan_in))
        return jax.random.uniform(k, shape, jnp.float32, -bound, bound)

    wh = unif(ks[0], (in_feature, hidden), in_feature)   # pre-transposed (in, out)
    bh = unif(ks[1], (hidden,), in_feature)
    wv = unif(ks[2], (hidden, 1), hidden)
    bv = unif(ks[3], (1,), hidden)
    wa = unif(ks[4], (hidden, out_feature), hidden)
    ba = unif(ks[5], (out_feature,), hidden)
    return wh, bh, wv, bv, wa, ba


def reference_forward(x, wh, bh, wv, bv, wa, ba):
    h = jnp.maximum(x @ wh + bh, 0.0)
    v = h @ wv + bv
    a = h @ wa + ba
    return v + a - jnp.mean(a, axis=1, keepdims=True)


def reference_forward_bf16(x, wh, bh, wv, bv, wa, ba):
    # Mirrors the kernel's bf16 storage path: bf16 x / weights, f32 biases,
    # f32 accumulation, hidden activations quantized to bf16 before layer 2.
    bf = lambda t: t.astype(jnp.bfloat16).astype(jnp.float32)
    h = jnp.maximum(bf(x) @ bf(wh) + bh, 0.0)
    h = bf(h)
    v = h @ bf(wv) + bv
    a = h @ bf(wa) + ba
    return v + a - jnp.mean(a, axis=1, keepdims=True)


if __name__ == "__main__":
    IN_F, OUT_F = 4, 2      # CartPole: state dim 4, action dim 2
    key = jax.random.PRNGKey(0)
    k_x, k_x2, k_p = jax.random.split(key, 3)
    raw = init_params(k_p, IN_F, OUT_F)
    params = prepare_qnet_params(*raw)

    # Small batch (single grid step).
    x_small = jax.random.normal(k_x, (8, IN_F), dtype=jnp.float32)
    q = jax.block_until_ready(qnet_forward(x_small, params))
    q_ref = reference_forward(x_small, *raw)
    assert q.shape == (8, OUT_F)
    assert jnp.allclose(q, q_ref, atol=1e-5, rtol=1e-5), \
        float(jnp.max(jnp.abs(q - q_ref)))

    # Larger, non-multiple-of-tile batch: exercises the grid + row padding path.
    x_big = jax.random.normal(k_x2, (1000, IN_F), dtype=jnp.float32)
    q_big = jax.block_until_ready(qnet_forward(x_big, params, tile_b=512))
    q_big_ref = reference_forward(x_big, *raw)
    assert q_big.shape == (1000, OUT_F)
    assert jnp.allclose(q_big, q_big_ref, atol=1e-5, rtol=1e-5), \
        float(jnp.max(jnp.abs(q_big - q_big_ref)))

    # bf16 storage path (v6e/v7x: halves HBM traffic; f32 accumulation).
    params_bf16 = prepare_qnet_params(*raw, weight_dtype=jnp.bfloat16)
    q_bf16 = jax.block_until_ready(qnet_forward(x_big, params_bf16, tile_b=512))
    q_bf16_ref = reference_forward_bf16(x_big, *raw)
    assert jnp.allclose(q_bf16, q_bf16_ref, atol=1e-2, rtol=1e-2), \
        float(jnp.max(jnp.abs(q_bf16 - q_bf16_ref)))

    print("KERNEL_OK")
</pallas_src>

<mosaic_0001>
module attributes {stable_mosaic.version = 11 : i64} {
  func.func @qnet_kernel(%arg0: i32, %arg1: memref<8x4xf32, #tpu.memory_space<vmem>>, %arg2: memref<4x128xf32, #tpu.memory_space<vmem>>, %arg3: memref<1x128xf32, #tpu.memory_space<vmem>>, %arg4: memref<128x128xf32, #tpu.memory_space<vmem>>, %arg5: memref<1x128xf32, #tpu.memory_space<vmem>>, %arg6: memref<8x2xf32, #tpu.memory_space<vmem>>) attributes {dimension_semantics = [#tpu.dimension_semantics<parallel>], iteration_bounds = array<i64: 1>, scalar_prefetch = 0 : i64, scratch_operands = 0 : i64, tpu.core_type = #tpu.core_type<tc>, window_params = [{transform_indices = @transform_0, window_bounds = array<i64: 8, 4>}, {pipeline_mode = #tpu.pipeline_mode<synchronous>, transform_indices = @transform_1, window_bounds = array<i64: 4, 128>}, {pipeline_mode = #tpu.pipeline_mode<synchronous>, transform_indices = @transform_2, window_bounds = array<i64: 1, 128>}, {pipeline_mode = #tpu.pipeline_mode<synchronous>, transform_indices = @transform_3, window_bounds = array<i64: 128, 128>}, {pipeline_mode = #tpu.pipeline_mode<synchronous>, transform_indices = @transform_4, window_bounds = array<i64: 1, 128>}, {transform_indices = @transform_5, window_bounds = array<i64: 8, 2>}]} {
    %c0 = arith.constant 0 : index
    %c0_0 = arith.constant 0 : index
    %0 = vector.load %arg1[%c0, %c0_0] : memref<8x4xf32, #tpu.memory_space<vmem>>, vector<8x4xf32>
    %c0_1 = arith.constant 0 : index
    %c0_2 = arith.constant 0 : index
    %1 = vector.load %arg2[%c0_1, %c0_2] : memref<4x128xf32, #tpu.memory_space<vmem>>, vector<4x128xf32>
    %cst = arith.constant dense<0.000000e+00> : vector<8x128xf32>
    %2 = tpu.matmul %0, %1, %cst {dimension_numbers = #tpu.dot_dimension_numbers<[1], [0], [0], [1], [0, 0, 1, 1], [], []>} : vector<8x4xf32>, vector<4x128xf32>, vector<8x128xf32> -> vector<8x128xf32>
    %c0_3 = arith.constant 0 : index
    %c0_4 = arith.constant 0 : index
    %3 = vector.load %arg3[%c0_3, %c0_4] : memref<1x128xf32, #tpu.memory_space<vmem>>, vector<1x128xf32>
    %4 = vector.broadcast %3 : vector<1x128xf32> to vector<8x128xf32>
    %5 = arith.addf %2, %4 : vector<8x128xf32>
    %cst_5 = arith.constant 0.000000e+00 : f32
    %6 = vector.broadcast %cst_5 : f32 to vector<8x128xf32>
    %7 = arith.maximumf %5, %6 : vector<8x128xf32>
    %c0_6 = arith.constant 0 : index
    %c0_7 = arith.constant 0 : index
    %8 = vector.load %arg4[%c0_6, %c0_7] : memref<128x128xf32, #tpu.memory_space<vmem>>, vector<128x128xf32>
    %cst_8 = arith.constant dense<0.000000e+00> : vector<8x128xf32>
    %9 = tpu.matmul %7, %8, %cst_8 {dimension_numbers = #tpu.dot_dimension_numbers<[1], [0], [0], [1], [0, 0, 1, 1], [], []>} : vector<8x128xf32>, vector<128x128xf32>, vector<8x128xf32> -> vector<8x128xf32>
    %c0_9 = arith.constant 0 : index
    %c0_10 = arith.constant 0 : index
    %10 = vector.load %arg5[%c0_9, %c0_10] : memref<1x128xf32, #tpu.memory_space<vmem>>, vector<1x128xf32>
    %11 = vector.broadcast %10 : vector<1x128xf32> to vector<8x128xf32>
    %12 = arith.addf %9, %11 : vector<8x128xf32>
    %13 = vector.extract_strided_slice %12 {offsets = [0, 127], sizes = [8, 1], strides = [1, 1]} : vector<8x128xf32> to vector<8x1xf32>
    %14 = vector.extract_strided_slice %12 {offsets = [0, 0], sizes = [8, 2], strides = [1, 1]} : vector<8x128xf32> to vector<8x2xf32>
    %cst_11 = arith.constant dense<0.000000e+00> : vector<8xf32>
    %15 = vector.multi_reduction <add>, %12, %cst_11 [1] : vector<8x128xf32> to vector<8xf32>
    %16 = vector.shape_cast %15 : vector<8xf32> to vector<8x1xf32>
    %17 = arith.subf %16, %13 : vector<8x1xf32>
    %cst_12 = arith.constant 5.000000e-01 : f32
    %18 = vector.broadcast %cst_12 : f32 to vector<8x1xf32>
    %19 = arith.mulf %17, %18 : vector<8x1xf32>
    %20 = arith.subf %13, %19 : vector<8x1xf32>
    %21 = vector.broadcast %20 : vector<8x1xf32> to vector<8x2xf32>
    %22 = arith.addf %14, %21 : vector<8x2xf32>
    %c0_13 = arith.constant 0 : index
    %c0_14 = arith.constant 0 : index
    %23 = vector.load %arg6[%c0_13, %c0_14] : memref<8x2xf32, #tpu.memory_space<vmem>>, vector<8x2xf32>
    tpu.vector_store %arg6[%c0_13, %c0_14], %22 {strides = array<i32>} : memref<8x2xf32, #tpu.memory_space<vmem>>, vector<8x2xf32>,
    return
  }
  func.func @transform_0(%arg0: i32) -> (i32, i32) {
    %c0_i32 = arith.constant 0 : i32
    %c0_i32_0 = arith.constant 0 : i32
    return %arg0, %c0_i32 : i32, i32
  }
  func.func @transform_1(%arg0: i32) -> (i32, i32) {
    %c0_i32 = arith.constant 0 : i32
    %c0_i32_0 = arith.constant 0 : i32
    %c0_i32_1 = arith.constant 0 : i32
    return %c0_i32, %c0_i32_0 : i32, i32
  }
  func.func @transform_2(%arg0: i32) -> (i32, i32) {
    %c0_i32 = arith.constant 0 : i32
    %c0_i32_0 = arith.constant 0 : i32
    %c0_i32_1 = arith.constant 0 : i32
    return %c0_i32, %c0_i32_0 : i32, i32
  }
  func.func @transform_3(%arg0: i32) -> (i32, i32) {
    %c0_i32 = arith.constant 0 : i32
    %c0_i32_0 = arith.constant 0 : i32
    %c0_i32_1 = arith.constant 0 : i32
    return %c0_i32, %c0_i32_0 : i32, i32
  }
  func.func @transform_4(%arg0: i32) -> (i32, i32) {
    %c0_i32 = arith.constant 0 : i32
    %c0_i32_0 = arith.constant 0 : i32
    %c0_i32_1 = arith.constant 0 : i32
    return %c0_i32, %c0_i32_0 : i32, i32
  }
  func.func @transform_5(%arg0: i32) -> (i32, i32) {
    %c0_i32 = arith.constant 0 : i32
    %c0_i32_0 = arith.constant 0 : i32
    return %arg0, %c0_i32 : i32, i32
  }
}

</mosaic_0001>

<llo_original>
// kernel: tpu_custom_call.1
$region0: #{tpu_custom_call.1}
  #allocation0 [shape = 'u32[]', space=smem, size = 0x4, offset = 0x4, fixed_abs, tag = 'smem constant byte address 0x4 - core index']
  #allocation1 [shape = 'u32[144,128]{1,0:T(1,128)}', space=vmem, size = 0x12000, scoped, tag = 'internal scratch']
  %s0 = inlined_call_operand.vmem [shape: f32[8,4], index: 0, kind: input, shape index: {}]
  %s1 = inlined_call_operand.vmem [shape: f32[4,128], index: 1, kind: input, shape index: {}]
  %s2 = inlined_call_operand.vmem [shape: f32[1,128], index: 2, kind: input, shape index: {}]
  %s3 = inlined_call_operand.hbm [shape: f32[128,128], index: 3, kind: input, shape index: {}]
  %s4 = inlined_call_operand.vmem [shape: f32[1,128], index: 4, kind: input, shape index: {}]
  %s5 = inlined_call_operand.vmem [shape: f32[8,2], index: 5, kind: output, shape index: {}]
  %s6 = sld [smem:[#allocation0]]
  $region34: #{tpu_custom_call.1} parent=0
    _
  %s8 = ssub.s32 1, %s6
  %s9 = scalar_select 0, %s8, %s6
  $region1: #{tpu_custom_call.1} parent=0
    #allocation2 [shape = 'u8[65536]{0}', space=vmem, size = 0x10000, scoped, tag = 'input window, operand 3, single buffered']
    #allocation3 [shape = 's32[1]{0}', space=sflag, size = 0x4, scoped, tag = 'scoped memory for tpu_custom_call.1']
    %10 = vsyncpa [#allocation3], 0
    // Predicated region
    $region2: #{tpu_custom_call.1} parent=1 // pred_check
      _
    $region3: #{tpu_custom_call.1} parent=1 // pred_check_branch
      %12 = sbr.rel (0) target = $region5
    $region4: #{tpu_custom_call.1} parent=1 // pred_region
      _
    $region5: #{tpu_custom_call.1} parent=1 // pred_fallthru
      _
    // Predicated region
    $region6: #{tpu_custom_call.1} parent=1 // pred_check
      _
    $region7: #{tpu_custom_call.1} parent=1 // pred_check_branch
      %14 = sbr.rel (0) target = $region9
    $region8: #{tpu_custom_call.1} parent=1 // pred_region
      _
    $region9: #{tpu_custom_call.1} parent=1 // pred_fallthru
      _
    // Predicated region
    $region10: #{tpu_custom_call.1} parent=1 // pred_check
      _
    $region11: #{tpu_custom_call.1} parent=1 // pred_check_branch
      %16 = sbr.rel (0) target = $region13
    $region12: #{tpu_custom_call.1} parent=1 // pred_region
      _
    $region13: #{tpu_custom_call.1} parent=1 // pred_fallthru
      _
    // Predicated region
    $region14: #{tpu_custom_call.1} parent=1 // pred_check
      _
    $region15: #{tpu_custom_call.1} parent=1 // pred_check_branch
      %18 = sbr.rel (0) target = $region17
    $region16: #{tpu_custom_call.1} parent=1 // pred_region
      %s20 = ssub.s32 2048, 2048
      %21 = vsyncadd [#allocation3], %s20
      %s22 = sshll.u32 [#allocation2], 4
      %s23 = int_to_ptr.vmem [resolvable:$true] %s22
      %28 = dma.hbm_to_vmem [thread:$0]  %s3, 2048, %s23, [#allocation3], 128, 128, 8
    $region17: #{tpu_custom_call.1} parent=1 // pred_fallthru
      _
    // Predicated region
    $region18: #{tpu_custom_call.1} parent=1 // pred_check
      _
    $region19: #{tpu_custom_call.1} parent=1 // pred_check_branch
      %30 = sbr.rel (0) target = $region21
    $region20: #{tpu_custom_call.1} parent=1 // pred_region
      _
    $region21: #{tpu_custom_call.1} parent=1 // pred_fallthru
      _
    // Predicated region
    $region22: #{tpu_custom_call.1} parent=1 // pred_check
      _
    $region23: #{tpu_custom_call.1} parent=1 // pred_check_branch
      %32 = sbr.rel (0) target = $region25
    $region24: #{tpu_custom_call.1} parent=1 // pred_region
      %33 = dma.done [#allocation3], 2048
    $region25: #{tpu_custom_call.1} parent=1 // pred_fallthru
      _
    %v34 = vld [vmem:[%s0] sm:$0xff]
    %v35 = vld [vmem:[%s1] sm:$0xf]
    %v36 = vld [vmem:[%s2] sm:$0x1]
    %v38 = vlaneseq
    %v39 = vshrl.u32 %v38, 7
    %v40 = vsub.s32 0, %v39
    %v41 = vrot.slane %v36, %v40
    %vm43 = vcmask 31744
    %v45 = vsel %vm43, %v34, 0
    %vm47 = vcmask 1043456
    %v49 = vsel %vm47, %v35, 0
    %51 = vmatprep.subr.mxu0 0.0
    %52 = vmatpush1.msra.mxu0 %v49
    %53 = vmatprep.subr.mxu0 0.0
    %54 = vmatpush1.msra.mxu0 0.0
    %55 = vmatprep.subr.mxu0 0.0
    %56 = vmatpush1.msra.mxu0 0.0
    %57 = vmatprep.subr.mxu0 0.0
    %58 = vmatpush1.msra.mxu0 0.0
    %59 = vmatprep.subr.mxu0 0.0
    %60 = vmatpush1.msra.mxu0 0.0
    %61 = vmatprep.subr.mxu0 0.0
    %62 = vmatpush1.msra.mxu0 0.0
    %63 = vmatprep.subr.mxu0 0.0
    %64 = vmatpush1.msra.mxu0 0.0
    %65 = vmatprep.subr.mxu0 0.0
    %66 = vmatpush1.msra.mxu0 0.0
    %67 = vmatprep.subr.mxu0 0.0
    %68 = vmatpush1.msra.mxu0 0.0
    %69 = vmatprep.subr.mxu0 0.0
    %70 = vmatpush1.msra.mxu0 0.0
    %71 = vmatprep.subr.mxu0 0.0
    %72 = vmatpush1.msra.mxu0 0.0
    %73 = vmatprep.subr.mxu0 0.0
    %74 = vmatpush1.msra.mxu0 0.0
    %75 = vmatprep.subr.mxu0 0.0
    %76 = vmatpush1.msra.mxu0 0.0
    %77 = vmatprep.subr.mxu0 0.0
    %78 = vmatpush1.msra.mxu0 0.0
    %79 = vmatprep.subr.mxu0 0.0
    %80 = vmatpush1.msra.mxu0 0.0
    %81 = vmatprep.subr.mxu0 0.0
    %82 = vmatpush1.msra.mxu0 0.0
    %83 = vmatprep.subr.mxu0 0.0
    %84 = vmatpush1.msra.mxu0 0.0
    %85 = vmatprep.subr.mxu0 0.0
    %86 = vmatpush1.msra.mxu0 0.0
    %87 = vmatprep.subr.mxu0 0.0
    %88 = vmatpush1.msra.mxu0 0.0
    %89 = vmatprep.subr.mxu0 0.0
    %90 = vmatpush1.msra.mxu0 0.0
    %91 = vmatprep.subr.mxu0 0.0
    %92 = vmatpush1.msra.mxu0 0.0
    %93 = vmatprep.subr.mxu0 0.0
    %94 = vmatpush1.msra.mxu0 0.0
    %95 = vmatprep.subr.mxu0 0.0
    %96 = vmatpush1.msra.mxu0 0.0
    %97 = vmatprep.subr.mxu0 0.0
    %98 = vmatpush1.msra.mxu0 0.0
    %99 = vmatprep.subr.mxu0 0.0
    %100 = vmatpush1.msra.mxu0 0.0
    %101 = vmatprep.subr.mxu0 0.0
    %102 = vmatpush1.msra.mxu0 0.0
    %103 = vmatprep.subr.mxu0 0.0
    %104 = vmatpush1.msra.mxu0 0.0
    %105 = vmatprep.subr.mxu0 0.0
    %106 = vmatpush1.msra.mxu0 0.0
    %107 = vmatprep.subr.mxu0 0.0
    %108 = vmatpush1.msra.mxu0 0.0
    %109 = vmatprep.subr.mxu0 0.0
    %110 = vmatpush1.msra.mxu0 0.0
    %111 = vmatprep.subr.mxu0 0.0
    %112 = vmatpush1.msra.mxu0 0.0
    %113 = vmatprep.subr.mxu0 0.0
    %114 = vmatpush1.msra.mxu0 0.0
    %115 = vmatprep.mubr.f32.mxu0 0.0
    %116 = vmatmul.mubr.f32.gmra.mrb[0].mxu0 %v45
    %v117 = vpop.f32.mrb[0].mxu0
    %v118 = vadd.f32 %v41, %v117
    %v119 = vpop.f32.mrb[0].mxu0
    %120 = vdwg.mxu0
    %v121 = vmax.f32 %v118, 0.0
    %v122 = vld [vmem:[#allocation2] sm:$0xff]
    %v123 = vld [vmem:[#allocation2 + $0x8] sm:$0xff]
    %v124 = vld [vmem:[#allocation2 + $0x10] sm:$0xff]
    %v125 = vld [vmem:[#allocation2 + $0x18] sm:$0xff]
    %v126 = vld [vmem:[#allocation2 + $0x20] sm:$0xff]
    %v127 = vld [vmem:[#allocation2 + $0x28] sm:$0xff]
    %v128 = vld [vmem:[#allocation2 + $0x30] sm:$0xff]
    %v129 = vld [vmem:[#allocation2 + $0x38] sm:$0xff]
    %v130 = vld [vmem:[#allocation2 + $0x40] sm:$0xff]
    %v131 = vld [vmem:[#allocation2 + $0x48] sm:$0xff]
    %v132 = vld [vmem:[#allocation2 + $0x50] sm:$0xff]
    %v133 = vld [vmem:[#allocation2 + $0x58] sm:$0xff]
    %v134 = vld [vmem:[#allocation2 + $0x60] sm:$0xff]
    %v135 = vld [vmem:[#allocation2 + $0x68] sm:$0xff]
    %v136 = vld [vmem:[#allocation2 + $0x70] sm:$0xff]
    %v137 = vld [vmem:[#allocation2 + $0x78] sm:$0xff]
    %v138 = vld [vmem:[%s4] sm:$0x1]
    %v140 = vlaneseq
    %v141 = vshrl.u32 %v140, 7
    %v142 = vsub.s32 0, %v141
    %v143 = vrot.slane %v138, %v142
    %145 = vmatprep.subr.mxu0 0.0
    %146 = vmatpush1.msra.mxu0 %v122
    %147 = vmatprep.subr.mxu0 0.0
    %148 = vmatpush1.msra.mxu0 %v123
    %149 = vmatprep.subr.mxu0 0.0
    %150 = vmatpush1.msra.mxu0 %v124
    %151 = vmatprep.subr.mxu0 0.0
    %152 = vmatpush1.msra.mxu0 %v125
    %153 = vmatprep.subr.mxu0 0.0
    %154 = vmatpush1.msra.mxu0 %v126
    %155 = vmatprep.subr.mxu0 0.0
    %156 = vmatpush1.msra.mxu0 %v127
    %157 = vmatprep.subr.mxu0 0.0
    %158 = vmatpush1.msra.mxu0 %v128
    %159 = vmatprep.subr.mxu0 0.0
    %160 = vmatpush1.msra.mxu0 %v129
    %161 = vmatprep.subr.mxu0 0.0
    %162 = vmatpush1.msra.mxu0 %v130
    %163 = vmatprep.subr.mxu0 0.0
    %164 = vmatpush1.msra.mxu0 %v131
    %165 = vmatprep.subr.mxu0 0.0
    %166 = vmatpush1.msra.mxu0 %v132
    %167 = vmatprep.subr.mxu0 0.0
    %168 = vmatpush1.msra.mxu0 %v133
    %169 = vmatprep.subr.mxu0 0.0
    %170 = vmatpush1.msra.mxu0 %v134
    %171 = vmatprep.subr.mxu0 0.0
    %172 = vmatpush1.msra.mxu0 %v135
    %173 = vmatprep.subr.mxu0 0.0
    %174 = vmatpush1.msra.mxu0 %v136
    %175 = vmatprep.subr.mxu0 0.0
    %176 = vmatpush1.msra.mxu0 %v137
    %177 = vmatprep.subr.mxu0 0.0
    %178 = vmatpush1.msra.mxu0 0.0
    %179 = vmatprep.subr.mxu0 0.0
    %180 = vmatpush1.msra.mxu0 0.0
    %181 = vmatprep.subr.mxu0 0.0
    %182 = vmatpush1.msra.mxu0 0.0
    %183 = vmatprep.subr.mxu0 0.0
    %184 = vmatpush1.msra.mxu0 0.0
    %185 = vmatprep.subr.mxu0 0.0
    %186 = vmatpush1.msra.mxu0 0.0
    %187 = vmatprep.subr.mxu0 0.0
    %188 = vmatpush1.msra.mxu0 0.0
    %189 = vmatprep.subr.mxu0 0.0
    %190 = vmatpush1.msra.mxu0 0.0
    %191 = vmatprep.subr.mxu0 0.0
    %192 = vmatpush1.msra.mxu0 0.0
    %193 = vmatprep.subr.mxu0 0.0
    %194 = vmatpush1.msra.mxu0 0.0
    %195 = vmatprep.subr.mxu0 0.0
    %196 = vmatpush1.msra.mxu0 0.0
    %197 = vmatprep.subr.mxu0 0.0
    %198 = vmatpush1.msra.mxu0 0.0
    %199 = vmatprep.subr.mxu0 0.0
    %200 = vmatpush1.msra.mxu0 0.0
    %201 = vmatprep.subr.mxu0 0.0
    %202 = vmatpush1.msra.mxu0 0.0
    %203 = vmatprep.subr.mxu0 0.0
    %204 = vmatpush1.msra.mxu0 0.0
    %205 = vmatprep.subr.mxu0 0.0
    %206 = vmatpush1.msra.mxu0 0.0
    %207 = vmatprep.subr.mxu0 0.0
    %208 = vmatpush1.msra.mxu0 0.0
    %209 = vmatprep.mubr.f32.mxu0 0.0
    %210 = vmatmul.mubr.f32.gmra.mrb[0].mxu0 %v121
    %v211 = vpop.f32.mrb[0].mxu0
    %v212 = vadd.f32 %v143, %v211
    %v213 = vpop.f32.mrb[0].mxu0
    %214 = vdwg.mxu0
    %215 = vadd.xlane.f32.xlu0 %v212
    %v216 = vpop.xlane.xlu0 %215
    %v217 = vsub.f32 %v216, %v212
    %v218 = vmul.f32 %v217, 0.5
    %v219 = vsub.f32 %v212, %v218
    %221 = vset.pattern.permute.xlu0 127
    %222 = vperm.xlu0 %221, %v219
    %v223 = vpop.permute.xlu0 %222
    %v225 = vadd.f32 %v212, %v223
    %vm226 = vcmask 15360
    %227 = vst.msk [vmem:[%s5] sm:$0xff] %vm226, %v225
    // Predicated region
    $region26: #{tpu_custom_call.1} parent=1 // pred_check
      _
    $region27: #{tpu_custom_call.1} parent=1 // pred_check_branch
      %229 = sbr.rel (0) target = $region29
    $region28: #{tpu_custom_call.1} parent=1 // pred_region
      _
    $region29: #{tpu_custom_call.1} parent=1 // pred_fallthru
      _
    // Predicated region
    $region30: #{tpu_custom_call.1} parent=1 // pred_check
      _
    $region31: #{tpu_custom_call.1} parent=1 // pred_check_branch
      %231 = sbr.rel (0) target = $region33
    $region32: #{tpu_custom_call.1} parent=1 // pred_region
      _
    $region33: #{tpu_custom_call.1} parent=1 // pred_fallthru
      _
    %232 = vsyncpa [#allocation3], 1

</llo_original>
